<compile_context>
chip_gen: v5e
topology: v5e:2x2
jax: 0.10.0
libtpu: 0.0.40
codegen_flags: <defaults>
</compile_context>

<pallas_src>
import functools

import jax
import jax.numpy as jnp
from jax.experimental import pallas as pl
from jax.experimental.pallas import tpu as pltpu


def _row_pack_factor(H, W):
    """Pick r (divisor of H) so the packed lane dim L = r*W is >=128, ideally %128 == 0."""
    best = 1
    for r in range(1, H + 1):
        if H % r:
            continue
        if r * W > 256:
            break
        if (r * W) % 128 == 0:
            return r
        if r * W >= 128 and best == 1:
            best = r
    return best


def _build_bands(weight, r, W, s_offsets, C):
    """Banded conv matrices B[s] of shape (2L, L), L = r * W.

    y_packed[g] = sum_s shift_rows(cat[g + s]) @ B[s], where cat = [sum_map | max_map]
    concatenated along lanes, shift_rows zero-fills out-of-range row groups, and
      B[s][c*L + ui*W + wi, uo*W + wo] = w[c, ui + s*r - uo + P, wi - wo + P]
    (zero when the kernel index is outside [0, K)).  The conv's zero padding and the
    1/C mean normalization (c == 0, the avg channel) are folded into the band weights,
    so no padded scratch and no per-element scaling are needed in the kernel.
    """
    K = weight.shape[-1]
    P = K // 2
    L = r * W
    w = weight.reshape(2, K, K).astype(jnp.float32)
    w = jnp.stack([w[0] * (1.0 / C), w[1]], axis=0)   # fold mean normalization into avg band
    ui = jnp.arange(r).reshape(r, 1, 1, 1)
    wi = jnp.arange(W).reshape(1, W, 1, 1)
    uo = jnp.arange(r).reshape(1, 1, r, 1)
    wo = jnp.arange(W).reshape(1, 1, 1, W)
    dx = wi - wo + P
    dx_ok = (dx >= 0) & (dx < K)
    dxc = jnp.clip(dx, 0, K - 1)
    bands = []
    for s in s_offsets:
        dy = ui + s * r - uo + P
        dy_ok = (dy >= 0) & (dy < K)
        dyc = jnp.clip(dy, 0, K - 1)
        per_c = []
        for c in range(2):
            vals = w[c][dyc, dxc]                              # (r, W, r, W)
            band = jnp.where(dy_ok & dx_ok, vals, 0.0).reshape(L, L)
            per_c.append(band)
        bands.append(jnp.concatenate(per_c, axis=0))           # (2L, L)
    return jnp.stack(bands, axis=0)                            # (n_s, 2L, L)


def _shift_rows(m, s):
    """Row g of the result = m[g + s]; zeros out of range (s is a static int)."""
    if s == 0:
        return m
    G = m.shape[0]
    if abs(s) >= G:
        return jnp.zeros_like(m)
    z = jnp.zeros((abs(s), m.shape[1]), m.dtype)
    if s > 0:
        return jnp.concatenate([m[s:], z], axis=0)
    return jnp.concatenate([z, m[:s]], axis=0)


def _spatial_attention_kernel(band_ref, x_ref, o_ref, sum_ref, max_ref, *,
                              C, CC, s_offsets, mask_tail):
    """Grid = (B, num_channel_chunks).

    band_ref : VMEM (n_s, 2L, L)   banded conv weights (mean norm + zero-pad folded in)
    x_ref    : VMEM (1, CC, G, L)  packed input chunk (G row-groups, L = r*W lanes)
    o_ref    : VMEM (1, G, L)      packed sigmoid attention map
    sum_ref  : VMEM (G, L) f32     running channel sum
    max_ref  : VMEM (G, L) f32     running channel max
    """
    c_idx = pl.program_id(1)
    n_c = pl.num_programs(1)

    @pl.when(c_idx == 0)
    def _init():
        sum_ref[...] = jnp.zeros(sum_ref.shape, sum_ref.dtype)
        max_ref[...] = jnp.full(max_ref.shape, -jnp.inf, max_ref.dtype)

    # Chunked channel reduction (lane-dense; reduction over the outer chunk axis is
    # pure VPU adds/maxes, no XLU work).
    chunk = x_ref[0].astype(jnp.float32)                       # (CC, G, L)
    if mask_tail:
        valid = C - c_idx * CC
        ids = jax.lax.broadcasted_iota(jnp.int32, chunk.shape, 0)
        keep = ids < valid
        psum = jnp.sum(jnp.where(keep, chunk, 0.0), axis=0)
        pmax = jnp.max(jnp.where(keep, chunk, -jnp.inf), axis=0)
    else:
        psum = jnp.sum(chunk, axis=0)
        pmax = jnp.max(chunk, axis=0)
    sum_ref[...] = sum_ref[...] + psum
    max_ref[...] = jnp.maximum(max_ref[...], pmax)

    @pl.when(c_idx == n_c - 1)
    def _finalize():
        G, L = sum_ref.shape
        # Concatenate the two reduced maps along lanes once; one MXU matmul per
        # vertical row-group shift handles both conv input channels.
        cat = jnp.concatenate([sum_ref[...], max_ref[...]], axis=1)   # (G, 2L)
        y = jnp.zeros((G, L), jnp.float32)
        for si, s in enumerate(s_offsets):
            if abs(s) >= G:          # statically-empty shift -> skip
                continue
            y = y + jnp.dot(_shift_rows(cat, s), band_ref[si],
                            preferred_element_type=jnp.float32)
        o_ref[0] = jax.nn.sigmoid(y).astype(o_ref.dtype)       # lane-dense store


def self_attention(x, weight):
    """x: (B, C, H, W), weight: (1, 2, K, K) -> (B, 1, H, W) sigmoid spatial attention."""
    B, C, H, W = x.shape
    K = weight.shape[-1]
    P = K // 2

    # Pack r rows per lane-group so the lane dim L = r*W is >= 128 (lane-dense).
    r = _row_pack_factor(H, W)
    G, L = H // r, r * W
    s_offsets = tuple(range((-P) // r, (r - 1 + P) // r + 1))
    bands = _build_bands(weight, r, W, s_offsets, C)           # (n_s, 2L, L) f32

    # Channel-chunk size: keep the (vreg-padded) input block around ~2 MiB so the
    # double-buffered pipeline fits comfortably in scoped VMEM on every generation.
    padded_map_bytes = (((G + 7) // 8) * 8) * (((L + 127) // 128) * 128) * 4
    CC = max(1, min(C, (2 * 1024 * 1024) // padded_map_bytes))
    n_c = pl.cdiv(C, CC)

    x_r = x.reshape(B, C, G, L)                                # free, contiguous reshape

    kernel = functools.partial(
        _spatial_attention_kernel,
        C=C, CC=CC, s_offsets=s_offsets, mask_tail=(C % CC != 0))

    n_s = len(s_offsets)
    out = pl.pallas_call(
        kernel,
        out_shape=jax.ShapeDtypeStruct((B, G, L), x.dtype),
        grid_spec=pltpu.PrefetchScalarGridSpec(
            num_scalar_prefetch=0,
            grid=(B, n_c),
            in_specs=[
                pl.BlockSpec((n_s, 2 * L, L), lambda b, c: (0, 0, 0)),
                pl.BlockSpec((1, CC, G, L), lambda b, c: (b, c, 0, 0)),
            ],
            out_specs=pl.BlockSpec((1, G, L), lambda b, c: (b, 0, 0)),
            scratch_shapes=[pltpu.VMEM((G, L), jnp.float32),
                            pltpu.VMEM((G, L), jnp.float32)],
        ),
        compiler_params=pltpu.CompilerParams(
            dimension_semantics=("parallel", "arbitrary"),
            vmem_limit_bytes=32 * 1024 * 1024,
        ),
    )(bands, x_r)

    return out.reshape(B, 1, H, W)


def reference(x, weight):
    """Pure-JAX reference matching the PyTorch module."""
    P = weight.shape[-1] // 2
    avg = jnp.mean(x, axis=1, keepdims=True)
    mx = jnp.max(x, axis=1, keepdims=True)
    cat = jnp.concatenate([avg, mx], axis=1)
    y = jax.lax.conv_general_dilated(
        cat, weight, window_strides=(1, 1), padding=((P, P), (P, P)),
        dimension_numbers=("NCHW", "OIHW", "NCHW"))
    return jax.nn.sigmoid(y)


if __name__ == "__main__":
    key = jax.random.PRNGKey(0)
    kx, kw = jax.random.split(key)

    B, C, H, W = 2, 4, 16, 16
    K = 7
    x = jax.random.normal(kx, (B, C, H, W), dtype=jnp.float32)
    # nn.Conv2d(2, 1, 7, padding=3, bias=False) weight, deterministic.
    weight = jax.random.normal(kw, (1, 2, K, K), dtype=jnp.float32) * 0.1

    out = jax.block_until_ready(self_attention(x, weight))
    ref = jax.block_until_ready(reference(x, weight))

    assert out.shape == (B, 1, H, W)
    # MXU f32 matmuls may run as (multi-pass) bf16 depending on TPU generation, so allow
    # a small tolerance on the (0, 1)-ranged sigmoid outputs; structural bugs would show
    # up as O(1e-2..1e-1) differences.
    assert jnp.allclose(out, ref, atol=5e-3, rtol=5e-3), "mismatch vs reference"

    print("KERNEL_OK")
</pallas_src>

<mosaic_0001>
module attributes {stable_mosaic.version = 11 : i64} {
  func.func @_spatial_attention_kernel(%arg0: i32, %arg1: i32, %arg2: memref<3x256x128xf32, #tpu.memory_space<vmem>>, %arg3: memref<1x4x2x128xf32, #tpu.memory_space<vmem>>, %arg4: memref<1x2x128xf32, #tpu.memory_space<vmem>>, %arg5: memref<2x128xf32, #tpu.memory_space<vmem>>, %arg6: memref<2x128xf32, #tpu.memory_space<vmem>>) attributes {dimension_semantics = [#tpu.dimension_semantics<parallel>, #tpu.dimension_semantics<arbitrary>], iteration_bounds = array<i64: 2, 1>, scalar_prefetch = 0 : i64, scratch_operands = 2 : i64, tpu.core_type = #tpu.core_type<tc>, window_params = [{pipeline_mode = #tpu.pipeline_mode<synchronous>, transform_indices = @transform_0, window_bounds = array<i64: 3, 256, 128>}, {transform_indices = @transform_1, window_bounds = array<i64: 1, 4, 2, 128>}, {transform_indices = @transform_2, window_bounds = array<i64: 1, 2, 128>}]} {
    %c0_i32 = arith.constant 0 : i32
    %0 = arith.cmpi eq, %arg1, %c0_i32 : i32
    %1 = arith.extui %0 : i1 to i32
    %c0_i32_0 = arith.constant 0 : i32
    %2 = arith.cmpi ne, %1, %c0_i32_0 : i32
    scf.if %2 {
      %cst_15 = arith.constant 0.000000e+00 : f32
      %16 = vector.broadcast %cst_15 : f32 to vector<2x128xf32>
      %c0_16 = arith.constant 0 : index
      %c0_17 = arith.constant 0 : index
      %17 = vector.load %arg5[%c0_16, %c0_17] : memref<2x128xf32, #tpu.memory_space<vmem>>, vector<2x128xf32>
      tpu.vector_store %arg5[%c0_16, %c0_17], %16 {strides = array<i32>} : memref<2x128xf32, #tpu.memory_space<vmem>>, vector<2x128xf32>,
      %cst_18 = arith.constant 0xFF800000 : f32
      %18 = vector.broadcast %cst_18 : f32 to vector<2x128xf32>
      %c0_19 = arith.constant 0 : index
      %c0_20 = arith.constant 0 : index
      %19 = vector.load %arg6[%c0_19, %c0_20] : memref<2x128xf32, #tpu.memory_space<vmem>>, vector<2x128xf32>
      tpu.vector_store %arg6[%c0_19, %c0_20], %18 {strides = array<i32>} : memref<2x128xf32, #tpu.memory_space<vmem>>, vector<2x128xf32>,
    } else {
    }
    %c0 = arith.constant 0 : index
    %c0_1 = arith.constant 0 : index
    %c0_2 = arith.constant 0 : index
    %c0_3 = arith.constant 0 : index
    %3 = vector.load %arg3[%c0, %c0_1, %c0_2, %c0_3] : memref<1x4x2x128xf32, #tpu.memory_space<vmem>>, vector<1x4x2x128xf32>
    %4 = vector.shape_cast %3 : vector<1x4x2x128xf32> to vector<4x2x128xf32>
    %cst = arith.constant dense<0.000000e+00> : vector<2x128xf32>
    %5 = vector.multi_reduction <add>, %4, %cst [0] : vector<4x2x128xf32> to vector<2x128xf32>
    %cst_4 = arith.constant dense<0xFF800000> : vector<2x128xf32>
    %6 = vector.multi_reduction <maximumf>, %4, %cst_4 [0] : vector<4x2x128xf32> to vector<2x128xf32>
    %c0_5 = arith.constant 0 : index
    %c0_6 = arith.constant 0 : index
    %7 = vector.load %arg5[%c0_5, %c0_6] : memref<2x128xf32, #tpu.memory_space<vmem>>, vector<2x128xf32>
    %8 = arith.addf %7, %5 : vector<2x128xf32>
    %c0_7 = arith.constant 0 : index
    %c0_8 = arith.constant 0 : index
    %9 = vector.load %arg5[%c0_7, %c0_8] : memref<2x128xf32, #tpu.memory_space<vmem>>, vector<2x128xf32>
    tpu.vector_store %arg5[%c0_7, %c0_8], %8 {strides = array<i32>} : memref<2x128xf32, #tpu.memory_space<vmem>>, vector<2x128xf32>,
    %c0_9 = arith.constant 0 : index
    %c0_10 = arith.constant 0 : index
    %10 = vector.load %arg6[%c0_9, %c0_10] : memref<2x128xf32, #tpu.memory_space<vmem>>, vector<2x128xf32>
    %11 = arith.maximumf %10, %6 : vector<2x128xf32>
    %c0_11 = arith.constant 0 : index
    %c0_12 = arith.constant 0 : index
    %12 = vector.load %arg6[%c0_11, %c0_12] : memref<2x128xf32, #tpu.memory_space<vmem>>, vector<2x128xf32>
    tpu.vector_store %arg6[%c0_11, %c0_12], %11 {strides = array<i32>} : memref<2x128xf32, #tpu.memory_space<vmem>>, vector<2x128xf32>,
    %c0_i32_13 = arith.constant 0 : i32
    %13 = arith.cmpi eq, %arg1, %c0_i32_13 : i32
    %14 = arith.extui %13 : i1 to i32
    %c0_i32_14 = arith.constant 0 : i32
    %15 = arith.cmpi ne, %14, %c0_i32_14 : i32
    scf.if %15 {
      %c0_15 = arith.constant 0 : index
      %c0_16 = arith.constant 0 : index
      %16 = vector.load %arg5[%c0_15, %c0_16] : memref<2x128xf32, #tpu.memory_space<vmem>>, vector<2x128xf32>
      %c0_17 = arith.constant 0 : index
      %c0_18 = arith.constant 0 : index
      %17 = vector.load %arg6[%c0_17, %c0_18] : memref<2x128xf32, #tpu.memory_space<vmem>>, vector<2x128xf32>
      %18 = tpu.concatenate %16, %17 in 1 : vector<2x128xf32>, vector<2x128xf32> -> vector<2x256xf32>
      %cst_19 = arith.constant 0.000000e+00 : f32
      %19 = vector.broadcast %cst_19 : f32 to vector<2x128xf32>
      %cst_20 = arith.constant 0.000000e+00 : f32
      %20 = vector.broadcast %cst_20 : f32 to vector<1x256xf32>
      %21 = vector.extract_strided_slice %18 {offsets = [0, 0], sizes = [1, 256], strides = [1, 1]} : vector<2x256xf32> to vector<1x256xf32>
      %22 = tpu.concatenate %20, %21 in 0 : vector<1x256xf32>, vector<1x256xf32> -> vector<2x256xf32>
      %c0_21 = arith.constant 0 : index
      %c0_22 = arith.constant 0 : index
      %c0_23 = arith.constant 0 : index
      %23 = vector.load %arg2[%c0_21, %c0_22, %c0_23] : memref<3x256x128xf32, #tpu.memory_space<vmem>>, vector<1x256x128xf32>
      %24 = vector.shape_cast %23 : vector<1x256x128xf32> to vector<256x128xf32>
      %cst_24 = arith.constant dense<0.000000e+00> : vector<2x128xf32>
      %25 = tpu.matmul %22, %24, %cst_24 {dimension_numbers = #tpu.dot_dimension_numbers<[1], [0], [0], [1], [0, 0, 1, 1], [], []>} : vector<2x256xf32>, vector<256x128xf32>, vector<2x128xf32> -> vector<2x128xf32>
      %26 = arith.addf %19, %25 : vector<2x128xf32>
      %c1 = arith.constant 1 : index
      %c0_25 = arith.constant 0 : index
      %c0_26 = arith.constant 0 : index
      %27 = vector.load %arg2[%c1, %c0_25, %c0_26] : memref<3x256x128xf32, #tpu.memory_space<vmem>>, vector<1x256x128xf32>
      %28 = vector.shape_cast %27 : vector<1x256x128xf32> to vector<256x128xf32>
      %cst_27 = arith.constant dense<0.000000e+00> : vector<2x128xf32>
      %29 = tpu.matmul %18, %28, %cst_27 {dimension_numbers = #tpu.dot_dimension_numbers<[1], [0], [0], [1], [0, 0, 1, 1], [], []>} : vector<2x256xf32>, vector<256x128xf32>, vector<2x128xf32> -> vector<2x128xf32>
      %30 = arith.addf %26, %29 : vector<2x128xf32>
      %cst_28 = arith.constant 0.000000e+00 : f32
      %31 = vector.broadcast %cst_28 : f32 to vector<1x256xf32>
      %32 = vector.extract_strided_slice %18 {offsets = [1, 0], sizes = [1, 256], strides = [1, 1]} : vector<2x256xf32> to vector<1x256xf32>
      %33 = tpu.concatenate %32, %31 in 0 : vector<1x256xf32>, vector<1x256xf32> -> vector<2x256xf32>
      %c2 = arith.constant 2 : index
      %c0_29 = arith.constant 0 : index
      %c0_30 = arith.constant 0 : index
      %34 = vector.load %arg2[%c2, %c0_29, %c0_30] : memref<3x256x128xf32, #tpu.memory_space<vmem>>, vector<1x256x128xf32>
      %35 = vector.shape_cast %34 : vector<1x256x128xf32> to vector<256x128xf32>
      %cst_31 = arith.constant dense<0.000000e+00> : vector<2x128xf32>
      %36 = tpu.matmul %33, %35, %cst_31 {dimension_numbers = #tpu.dot_dimension_numbers<[1], [0], [0], [1], [0, 0, 1, 1], [], []>} : vector<2x256xf32>, vector<256x128xf32>, vector<2x128xf32> -> vector<2x128xf32>
      %37 = arith.addf %30, %36 : vector<2x128xf32>
      %38 = arith.negf %37 : vector<2x128xf32>
      %39 = math.exp %38 : vector<2x128xf32>
      %cst_32 = arith.constant 1.000000e+00 : f32
      %40 = vector.broadcast %cst_32 : f32 to vector<2x128xf32>
      %41 = arith.addf %40, %39 : vector<2x128xf32>
      %42 = arith.divf %40, %41 : vector<2x128xf32>
      %c0_33 = arith.constant 0 : index
      %c0_34 = arith.constant 0 : index
      %c0_35 = arith.constant 0 : index
      %43 = vector.load %arg4[%c0_33, %c0_34, %c0_35] : memref<1x2x128xf32, #tpu.memory_space<vmem>>, vector<1x2x128xf32>
      %44 = vector.shape_cast %43 : vector<1x2x128xf32> to vector<2x128xf32>
      %45 = vector.shape_cast %42 : vector<2x128xf32> to vector<1x2x128xf32>
      tpu.vector_store %arg4[%c0_33, %c0_34, %c0_35], %45 {strides = array<i32>} : memref<1x2x128xf32, #tpu.memory_space<vmem>>, vector<1x2x128xf32>,
    } else {
    }
    return
  }
  func.func @transform_0(%arg0: i32, %arg1: i32) -> (i32, i32, i32) {
    %c0_i32 = arith.constant 0 : i32
    %c0_i32_0 = arith.constant 0 : i32
    %c0_i32_1 = arith.constant 0 : i32
    %c0_i32_2 = arith.constant 0 : i32
    return %c0_i32, %c0_i32_0, %c0_i32_1 : i32, i32, i32
  }
  func.func @transform_1(%arg0: i32, %arg1: i32) -> (i32, i32, i32, i32) {
    %c0_i32 = arith.constant 0 : i32
    %c0_i32_0 = arith.constant 0 : i32
    %c0_i32_1 = arith.constant 0 : i32
    return %arg0, %arg1, %c0_i32, %c0_i32_0 : i32, i32, i32, i32
  }
  func.func @transform_2(%arg0: i32, %arg1: i32) -> (i32, i32, i32) {
    %c0_i32 = arith.constant 0 : i32
    %c0_i32_0 = arith.constant 0 : i32
    %c0_i32_1 = arith.constant 0 : i32
    return %arg0, %c0_i32, %c0_i32_0 : i32, i32, i32
  }
}

</mosaic_0001>

<llo_original>
// kernel: tpu_custom_call.1
$region0: #{tpu_custom_call.1}
  #allocation0 [shape = 'u32[]', space=smem, size = 0x4, offset = 0x4, fixed_abs, tag = 'smem constant byte address 0x4 - core index']
  #allocation1 [shape = 'u32[72,128]{1,0:T(1,128)}', space=vmem, size = 0x9000, scoped, tag = 'internal scratch']
  #allocation2 [shape = 'f32[2,128]{1,0:T(2,128)}', space=vmem, size = 0x400, scoped, tag = 'scratch operand']
  #allocation3 [shape = 'f32[2,128]{1,0:T(2,128)}', space=vmem, size = 0x400, scoped, tag = 'scratch operand']
  %s0 = inlined_call_operand.hbm [shape: f32[3,256,128], index: 0, kind: input, shape index: {}]
  %s1 = inlined_call_operand.hbm [shape: f32[2,4,2,128], index: 1, kind: input, shape index: {}]
  %s2 = inlined_call_operand.hbm [shape: f32[2,2,128], index: 2, kind: output, shape index: {}]
  %s3 = sld [smem:[#allocation0]]
  $region57: #{tpu_custom_call.1} parent=0
    _
  %s5 = ssub.s32 1, %s3
  %s6 = scalar_select 0, %s5, %s3
  $region1: #{tpu_custom_call.1} parent=0
    #allocation4 [shape = 'u8[393216]{0}', space=vmem, size = 0x60000, scoped, tag = 'input window, operand 0, single buffered']
    #allocation5 [shape = 's32[2]{0}', space=sflag, size = 0x8, scoped, tag = 'scoped memory for tpu_custom_call.1']
    #allocation6 [shape = 's32[2]{0}', space=sflag, size = 0x8, scoped, tag = 'scoped memory for tpu_custom_call.1']
    #allocation7 [shape = 'u8[8192]{0}', space=vmem, size = 0x2000, scoped, tag = 'input window, operand 1']
    #allocation8 [shape = 's32[2]{0}', space=sflag, size = 0x8, scoped, tag = 'scoped memory for tpu_custom_call.1']
    #allocation9 [shape = 'u8[2048]{0}', space=vmem, size = 0x800, scoped, tag = 'output window, operand 0']
    %7 = vsyncpa [#allocation5], 0
    %8 = vsyncpa [#allocation8], 0
    %s9 = scalar_lea.sflag [#allocation8], 1
    %10 = vsyncpa %s9, 0
    %11 = vsyncpa [#allocation6], 0
    %s12 = scalar_lea.sflag [#allocation6], 1
    %13 = vsyncpa %s12, 0
    loop: start=0, step=1, limit=4
    $region2: #{tpu_custom_call.1} parent=1 // loop_pre_header
      _
    $region3: #{tpu_custom_call.1} parent=1 // loop_header
      %s15 = sphi 0, %s19
      %p16 = scmp.ge.s32.totalorder %s15, 4
      %s22 = sphi 0, %s34
      %s23 = sphi 0, %s30
      %s24 = sphi 0, %s22
      %s25 = sphi 0, %s23
      %s26 = sphi 0, %s24
      %s27 = sphi 0, %s25
      %s35 = sphi 0, %s35
      %s37 = sphi 0, %s35
      %s38 = sphi 0, %s37
      %s52 = sphi 0, %s38
      %s60 = sphi 0, %s62
      %s63 = sphi 0, %s60
      %s64 = sphi 0, %s63
      %s80 = sphi 0, %s64
      %s86 = sphi 0, %s88
      %s89 = sphi 0, %s86
      %s90 = sphi 0, %s89
      %s106 = sphi 0, %s90
    $region4: #{tpu_custom_call.1} parent=1 // loop_header_branch
      %18 = sbr.rel (%p16) target = $region8
    $region5: #{tpu_custom_call.1} parent=1 // loop_body
      %s20 = ssub.s32 %s15, 1
      %s21 = ssub.s32 %s15, 2
      %s28 = sadd.s32 1, %s23
      %p29 = scmp.ge.s32.totalorder %s28, 1
      %s30 = scalar_select %p29, 0, %s28
      %s31 = sadd.s32 1, %s22
      %s32 = scalar_select %p29, %s31, %s22
      %p33 = scmp.ge.s32.totalorder %s32, 2
      %s34 = scalar_select %p33, 0, %s32
      %s36 = sadd.s32 %s35, 1
      %p39 = scmp.eq.s32.totalorder %s15, 1
      %p40 = scmp.ne.s32.totalorder %s35, %s37
      %p41 = scmp.eq.s32.totalorder %s15, 0
      %p42 = por %p40, %p41
      %p43 = scmp.ne.s32.totalorder %s35, %s37
      %p44 = scmp.eq.s32.totalorder %s20, 1
      %p45 = por %p43, %p44
      %p46 = scmp.ne.s32.totalorder %s37, %s38
      %p47 = scmp.eq.s32.totalorder %s20, 0
      %p48 = por %p46, %p47
      %p49 = scmp.ne.s32.totalorder %s37, %s38
      %p50 = scmp.eq.s32.totalorder %s21, 1
      %p51 = por %p49, %p50
      %p53 = scmp.ne.s32.totalorder %s38, %s52
      %p54 = scmp.eq.s32.totalorder %s21, 0
      %p55 = por %p53, %p54
      %s56 = ssub.s32 %s22, %s34
      %s57 = ssub.s32 %s23, %s30
      %s58 = sor.u32 %s56, %s57
      %p59 = scmp.eq.s32.totalorder %s58, 0
      %s61 = sadd.s32 %s60, 1
      %s62 = scalar_select %p59, %s60, %s61
      %p65 = pneg %p59
      %p66 = scmp.eq.s32.totalorder %s15, 1
      %p67 = por %p65, %p66
      %p68 = scmp.ne.s32.totalorder %s60, %s63
      %p69 = scmp.eq.s32.totalorder %s15, 0
      %p70 = por %p68, %p69
      %p71 = scmp.ne.s32.totalorder %s60, %s63
      %p72 = scmp.eq.s32.totalorder %s20, 1
      %p73 = por %p71, %p72
      %p74 = scmp.ne.s32.totalorder %s63, %s64
      %p75 = scmp.eq.s32.totalorder %s20, 0
      %p76 = por %p74, %p75
      %p77 = scmp.ne.s32.totalorder %s63, %s64
      %p78 = scmp.eq.s32.totalorder %s21, 1
      %p79 = por %p77, %p78
      %p81 = scmp.ne.s32.totalorder %s64, %s80
      %p82 = scmp.eq.s32.totalorder %s21, 0
      %p83 = por %p81, %p82
      %s84 = ssub.s32 %s22, %s34
      %p85 = scmp.eq.s32.totalorder %s84, 0
      %s87 = sadd.s32 %s86, 1
      %s88 = scalar_select %p85, %s86, %s87
      %p91 = pneg %p85
      %p92 = scmp.eq.s32.totalorder %s15, 1
      %p93 = por %p91, %p92
      %p94 = scmp.ne.s32.totalorder %s86, %s89
      %p95 = scmp.eq.s32.totalorder %s15, 0
      %p96 = por %p94, %p95
      %p97 = scmp.ne.s32.totalorder %s86, %s89
      %p98 = scmp.eq.s32.totalorder %s20, 1
      %p99 = por %p97, %p98
      %p100 = scmp.ne.s32.totalorder %s89, %s90
      %p101 = scmp.eq.s32.totalorder %s20, 0
      %p102 = por %p100, %p101
      %p103 = scmp.ne.s32.totalorder %s89, %s90
      %p104 = scmp.eq.s32.totalorder %s21, 1
      %p105 = por %p103, %p104
      %p107 = scmp.ne.s32.totalorder %s90, %s106
      %p108 = scmp.eq.s32.totalorder %s21, 0
      %p109 = por %p107, %p108
      %p110 = scmp.le.s32.totalorder 1, %s15
      %p111 = scmp.lt.s32.totalorder %s15, 3
      %p112 = pnand %p110, %p111
      %p113 = pneg %p112
      // Predicated region
      $region9: #{tpu_custom_call.1} parent=5 // pred_check
        _
      $region10: #{tpu_custom_call.1} parent=5 // pred_check_branch
        %115 = sbr.rel (%p112) target = $region12
      $region11: #{tpu_custom_call.1} parent=5 // pred_region
        %s116 = ssub.s32 %s15, 1
        // Predicated region
        $region13: #{tpu_custom_call.1} parent=11 // pred_check
          %p117 = pneg %p48
        $region14: #{tpu_custom_call.1} parent=11 // pred_check_branch
          %119 = sbr.rel (%p117) target = $region16
        $region15: #{tpu_custom_call.1} parent=11 // pred_region
          %121 = vsyncadd [#allocation5], 0
          %s122 = sshll.u32 %s0, 4
          %s123 = int_to_ptr.hbm [resolvable:$true] %s122
          %s124 = sshll.u32 [#allocation4], 4
          %s125 = int_to_ptr.vmem [resolvable:$true] %s124
          %130 = dma.hbm_to_vmem [thread:$0]  %s123, 12288, %s125, [#allocation5], 128, 128, 8
        $region16: #{tpu_custom_call.1} parent=11 // pred_fallthru
          _
      $region12: #{tpu_custom_call.1} parent=5 // pred_fallthru
        _
      %p131 = scmp.lt.s32.totalorder %s15, 2
      // Predicated region
      $region17: #{tpu_custom_call.1} parent=5 // pred_check
        %p132 = pneg %p131
      $region18: #{tpu_custom_call.1} parent=5 // pred_check_branch
        %134 = sbr.rel (%p132) target = $region20
      $region19: #{tpu_custom_call.1} parent=5 // pred_region
        // Predicated region
        $region21: #{tpu_custom_call.1} parent=19 // pred_check
          %p135 = pneg %p70
        $region22: #{tpu_custom_call.1} parent=19 // pred_check_branch
          %137 = sbr.rel (%p135) target = $region24
        $region23: #{tpu_custom_call.1} parent=19 // pred_region
          %s138 = sand.u32 %s60, 1
          %s139 = scalar_lea.sflag [#allocation8], %s138
          %s140 = sand.u32 %s60, 1
          %s141 = smul.addr %s140, 8
          %s142 = scalar_lea.vmem [#allocation7], %s141
          %s143 = smul.u32 4, %s23
          %145 = vsyncadd %s139, 0
          %s146 = smul.addr %s22, 4
          %s147 = sadd.s32 %s143, %s146
          %s148 = smul.addr %s147, 2
          %s149 = scalar_lea.hbm %s1, %s148
          %s150 = sshll.u32 %s149, 4
          %s151 = int_to_ptr.hbm [resolvable:$true] %s150
          %s152 = sshll.u32 %s142, 4
          %s153 = int_to_ptr.vmem [resolvable:$true] %s152
          %158 = dma.hbm_to_vmem [thread:$0]  %s151, 128, %s153, %s139, 32, 32, 2
        $region24: #{tpu_custom_call.1} parent=19 // pred_fallthru
          _
      $region20: #{tpu_custom_call.1} parent=5 // pred_fallthru
        _
      %p159 = scmp.le.s32.totalorder 1, %s15
      %p160 = scmp.lt.s32.totalorder %s15, 3
      %p161 = pnand %p159, %p160
      %p162 = pneg %p161
      // Predicated region
      $region25: #{tpu_custom_call.1} parent=5 // pred_check
        _
      $region26: #{tpu_custom_call.1} parent=5 // pred_check_branch
        %164 = sbr.rel (%p161) target = $region28
      $region27: #{tpu_custom_call.1} parent=5 // pred_region
        %s165 = ssub.s32 %s15, 1
        // Predicated region
        $region29: #{tpu_custom_call.1} parent=27 // pred_check
          %p166 = pneg %p48
        $region30: #{tpu_custom_call.1} parent=27 // pred_check_branch
          %168 = sbr.rel (%p166) target = $region32
        $region31: #{tpu_custom_call.1} parent=27 // pred_region
          %170 = dma.done [#allocation5], 12288
        $region32: #{tpu_custom_call.1} parent=27 // pred_fallthru
          _
        %s171 = sand.u32 %s63, 1
        %s172 = scalar_lea.sflag [#allocation8], %s171
        %s173 = sand.u32 %s63, 1
        %s174 = smul.addr %s173, 8
        %s175 = scalar_lea.vmem [#allocation7], %s174
        // Predicated region
        $region33: #{tpu_custom_call.1} parent=27 // pred_check
          %p176 = pneg %p76
        $region34: #{tpu_custom_call.1} parent=27 // pred_check_branch
          %178 = sbr.rel (%p176) target = $region36
        $region35: #{tpu_custom_call.1} parent=27 // pred_region
          %180 = dma.done %s172, 128
        $region36: #{tpu_custom_call.1} parent=27 // pred_fallthru
          _
        %p181 = pneg %p48
        %p182 = pneg %p45
        %s183 = sand.u32 %s63, 1
        %s184 = scalar_lea.sflag [#allocation8], %s183
        %s185 = sand.u32 %s63, 1
        %s186 = smul.addr %s185, 8
        %s187 = scalar_lea.vmem [#allocation7], %s186
        %p188 = pneg %p76
        %p189 = pneg %p73
        %p190 = pneg %p102
        %p191 = pneg %p99
        %s192 = sand.u32 %s89, 1
        %s193 = scalar_lea.sflag [#allocation6], %s192
        %s194 = sand.u32 %s89, 1
        %s195 = smul.addr %s194, 2
        %s196 = scalar_lea.vmem [#allocation9], %s195
        %s197 = smul.u32 4, %s25
        %p198 = scmp.eq.s32.totalorder %s25, 0
        // Predicated region
        $region37: #{tpu_custom_call.1} parent=27 // pred_check
          %p199 = pneg %p198
        $region38: #{tpu_custom_call.1} parent=27 // pred_check_branch
          %201 = sbr.rel (%p199) target = $region40
        $region39: #{tpu_custom_call.1} parent=27 // pred_region
          %202 = vst [vmem:[#allocation2] sm:$0x3] 0.0
          %203 = vst [vmem:[#allocation3] sm:$0x3] -inf
        $region40: #{tpu_custom_call.1} parent=27 // pred_fallthru
          _
        %v204 = vld [vmem:[%s175] sm:$0x3]
        %v205 = vld [vmem:[%s175 + $0x2] sm:$0x3]
        %v206 = vld [vmem:[%s175 + $0x4] sm:$0x3]
        %v207 = vld [vmem:[%s175 + $0x6] sm:$0x3]
        %vm208 = vcmask 1041408
        %v209 = vsel %vm208, %v204, 0.0
        %v210 = vsel %vm208, %v205, 0.0
        %v211 = vadd.f32 %v209, %v210
        %v212 = vsel %vm208, %v206, 0.0
        %v213 = vadd.f32 %v211, %v212
        %v214 = vsel %vm208, %v207, 0.0
        %v215 = vadd.f32 %v213, %v214
        %v216 = vsel %vm208, %v204, -inf
        %v217 = vsel %vm208, %v205, -inf
        %v218 = vsel %vm208, %v206, -inf
        %v219 = vsel %vm208, %v207, -inf
        %v220 = vmax.f32 %v216, %v217
        %v221 = vmax.f32 %v218, %v219
        %v222 = vmax.f32 %v220, %v221
        %v223 = vld [vmem:[#allocation2] sm:$0x3]
        %v224 = vadd.f32 %v223, %v215
        %225 = vst [vmem:[#allocation2] sm:$0x3] %v224
        %v226 = vld [vmem:[#allocation3] sm:$0x3]
        %v227 = vmax.f32 %v226, %v222
        %228 = vst [vmem:[#allocation3] sm:$0x3] %v227
        // Predicated region
        $region41: #{tpu_custom_call.1} parent=27 // pred_check
          %p229 = pneg %p198
        $region42: #{tpu_custom_call.1} parent=27 // pred_check_branch
          %231 = sbr.rel (%p229) target = $region44
        $region43: #{tpu_custom_call.1} parent=27 // pred_region
          %v232 = vld [vmem:[#allocation2] sm:$0x3]
          %v233 = vld [vmem:[#allocation3] sm:$0x3]
          %v236 = vrot.slane %v232, 7
          %v237 = vrot.slane %v233, 7
          %vm240 = vcmask 1040384
          %v241 = vsel %vm240, 0.0, %v236
          %v242 = vsel %vm240, 0.0, %v237
          %v243 = vld [vmem:[#allocation4] sm:$0xff]
          %v244 = vld [vmem:[#allocation4 + $0x8] sm:$0xff]
          %v245 = vld [vmem:[#allocation4 + $0x10] sm:$0xff]
          %v246 = vld [vmem:[#allocation4 + $0x18] sm:$0xff]
          %v247 = vld [vmem:[#allocation4 + $0x20] sm:$0xff]
          %v248 = vld [vmem:[#allocation4 + $0x28] sm:$0xff]
          %v249 = vld [vmem:[#allocation4 + $0x30] sm:$0xff]
          %v250 = vld [vmem:[#allocation4 + $0x38] sm:$0xff]
          %v251 = vld [vmem:[#allocation4 + $0x40] sm:$0xff]
          %v252 = vld [vmem:[#allocation4 + $0x48] sm:$0xff]
          %v253 = vld [vmem:[#allocation4 + $0x50] sm:$0xff]
          %v254 = vld [vmem:[#allocation4 + $0x58] sm:$0xff]
          %v255 = vld [vmem:[#allocation4 + $0x60] sm:$0xff]
          %v256 = vld [vmem:[#allocation4 + $0x68] sm:$0xff]
          %v257 = vld [vmem:[#allocation4 + $0x70] sm:$0xff]
          %v258 = vld [vmem:[#allocation4 + $0x78] sm:$0xff]
          %v259 = vld [vmem:[#allocation4 + $0x80] sm:$0xff]
          %v260 = vld [vmem:[#allocation4 + $0x88] sm:$0xff]
          %v261 = vld [vmem:[#allocation4 + $0x90] sm:$0xff]
          %v262 = vld [vmem:[#allocation4 + $0x98] sm:$0xff]
          %v263 = vld [vmem:[#allocation4 + $0xa0] sm:$0xff]
          %v264 = vld [vmem:[#allocation4 + $0xa8] sm:$0xff]
          %v265 = vld [vmem:[#allocation4 + $0xb0] sm:$0xff]
          %v266 = vld [vmem:[#allocation4 + $0xb8] sm:$0xff]
          %v267 = vld [vmem:[#allocation4 + $0xc0] sm:$0xff]
          %v268 = vld [vmem:[#allocation4 + $0xc8] sm:$0xff]
          %v269 = vld [vmem:[#allocation4 + $0xd0] sm:$0xff]
          %v270 = vld [vmem:[#allocation4 + $0xd8] sm:$0xff]
          %v271 = vld [vmem:[#allocation4 + $0xe0] sm:$0xff]
          %v272 = vld [vmem:[#allocation4 + $0xe8] sm:$0xff]
          %v273 = vld [vmem:[#allocation4 + $0xf0] sm:$0xff]
          %v274 = vld [vmem:[#allocation4 + $0xf8] sm:$0xff]
          %s275 = scalar_lea.vmem [#allocation4], 256
          %v276 = vld [vmem:[%s275] sm:$0xff]
          %v277 = vld [vmem:[%s275 + $0x8] sm:$0xff]
          %v278 = vld [vmem:[%s275 + $0x10] sm:$0xff]
          %v279 = vld [vmem:[%s275 + $0x18] sm:$0xff]
          %v280 = vld [vmem:[%s275 + $0x20] sm:$0xff]
          %v281 = vld [vmem:[%s275 + $0x28] sm:$0xff]
          %v282 = vld [vmem:[%s275 + $0x30] sm:$0xff]
          %v283 = vld [vmem:[%s275 + $0x38] sm:$0xff]
          %v284 = vld [vmem:[%s275 + $0x40] sm:$0xff]
          %v285 = vld [vmem:[%s275 + $0x48] sm:$0xff]
          %v286 = vld [vmem:[%s275 + $0x50] sm:$0xff]
          %v287 = vld [vmem:[%s275 + $0x58] sm:$0xff]
          %v288 = vld [vmem:[%s275 + $0x60] sm:$0xff]
          %v289 = vld [vmem:[%s275 + $0x68] sm:$0xff]
          %v290 = vld [vmem:[%s275 + $0x70] sm:$0xff]
          %v291 = vld [vmem:[%s275 + $0x78] sm:$0xff]
          %v292 = vld [vmem:[%s275 + $0x80] sm:$0xff]
          %v293 = vld [vmem:[%s275 + $0x88] sm:$0xff]
          %v294 = vld [vmem:[%s275 + $0x90] sm:$0xff]
          %v295 = vld [vmem:[%s275 + $0x98] sm:$0xff]
          %v296 = vld [vmem:[%s275 + $0xa0] sm:$0xff]
          %v297 = vld [vmem:[%s275 + $0xa8] sm:$0xff]
          %v298 = vld [vmem:[%s275 + $0xb0] sm:$0xff]
          %v299 = vld [vmem:[%s275 + $0xb8] sm:$0xff]
          %v300 = vld [vmem:[%s275 + $0xc0] sm:$0xff]
          %v301 = vld [vmem:[%s275 + $0xc8] sm:$0xff]
          %v302 = vld [vmem:[%s275 + $0xd0] sm:$0xff]
          %v303 = vld [vmem:[%s275 + $0xd8] sm:$0xff]
          %v304 = vld [vmem:[%s275 + $0xe0] sm:$0xff]
          %v305 = vld [vmem:[%s275 + $0xe8] sm:$0xff]
          %v306 = vld [vmem:[%s275 + $0xf0] sm:$0xff]
          %v307 = vld [vmem:[%s275 + $0xf8] sm:$0xff]
          %308 = vmatpush.msra.mxu0 %v291
          %309 = vmatpush.msra.mxu0 %v290
          %310 = vmatpush.msra.mxu0 %v289
          %311 = vmatpush.msra.mxu0 %v288
          %312 = vmatpush.msra.mxu0 %v287
          %313 = vmatpush.msra.mxu0 %v286
          %314 = vmatpush.msra.mxu0 %v285
          %315 = vmatpush.msra.mxu0 %v284
          %316 = vmatpush.msra.mxu0 %v283
          %317 = vmatpush.msra.mxu0 %v282
          %318 = vmatpush.msra.mxu0 %v281
          %319 = vmatpush.msra.mxu0 %v280
          %320 = vmatpush.msra.mxu0 %v279
          %321 = vmatpush.msra.mxu0 %v278
          %322 = vmatpush.msra.mxu0 %v277
          %323 = vmatpush.msra.mxu0 %v276
          %324 = vmatmul.f32.gmra.mxu0 %v232
          %v325 = vpop.f32.mrf.mxu0
          %v326 = vadd.f32 0.0, %v325
          %327 = vdwg.mxu0
          %328 = vmatpush.msra.mxu0 %v307
          %329 = vmatpush.msra.mxu0 %v306
          %330 = vmatpush.msra.mxu0 %v305
          %331 = vmatpush.msra.mxu0 %v304
          %332 = vmatpush.msra.mxu0 %v303
          %333 = vmatpush.msra.mxu0 %v302
          %334 = vmatpush.msra.mxu0 %v301
          %335 = vmatpush.msra.mxu0 %v300
          %336 = vmatpush.msra.mxu0 %v299
          %337 = vmatpush.msra.mxu0 %v298
          %338 = vmatpush.msra.mxu0 %v297
          %339 = vmatpush.msra.mxu0 %v296
          %340 = vmatpush.msra.mxu0 %v295
          %341 = vmatpush.msra.mxu0 %v294
          %342 = vmatpush.msra.mxu0 %v293
          %343 = vmatpush.msra.mxu0 %v292
          %344 = vmatmul.f32.gmra.mxu0 %v233
          %v345 = vpop.f32.mrf.mxu0
          %v346 = vadd.f32 %v326, %v345
          %347 = vdwg.mxu0
          %348 = vmatpush.msra.mxu0 %v258
          %349 = vmatpush.msra.mxu0 %v257
          %350 = vmatpush.msra.mxu0 %v256
          %351 = vmatpush.msra.mxu0 %v255
          %352 = vmatpush.msra.mxu0 %v254
          %353 = vmatpush.msra.mxu0 %v253
          %354 = vmatpush.msra.mxu0 %v252
          %355 = vmatpush.msra.mxu0 %v251
          %356 = vmatpush.msra.mxu0 %v250
          %357 = vmatpush.msra.mxu0 %v249
          %358 = vmatpush.msra.mxu0 %v248
          %359 = vmatpush.msra.mxu0 %v247
          %360 = vmatpush.msra.mxu0 %v246
          %361 = vmatpush.msra.mxu0 %v245
          %362 = vmatpush.msra.mxu0 %v244
          %363 = vmatpush.msra.mxu0 %v243
          %364 = vmatmul.f32.gmra.mxu0 %v241
          %v365 = vpop.f32.mrf.mxu0
          %v366 = vadd.f32 %v346, %v365
          %367 = vdwg.mxu0
          %368 = vmatpush.msra.mxu0 %v274
          %369 = vmatpush.msra.mxu0 %v273
          %370 = vmatpush.msra.mxu0 %v272
          %371 = vmatpush.msra.mxu0 %v271
          %372 = vmatpush.msra.mxu0 %v270
          %373 = vmatpush.msra.mxu0 %v269
          %374 = vmatpush.msra.mxu0 %v268
          %375 = vmatpush.msra.mxu0 %v267
          %376 = vmatpush.msra.mxu0 %v266
          %377 = vmatpush.msra.mxu0 %v265
          %378 = vmatpush.msra.mxu0 %v264
          %379 = vmatpush.msra.mxu0 %v263
          %380 = vmatpush.msra.mxu0 %v262
          %381 = vmatpush.msra.mxu0 %v261
          %382 = vmatpush.msra.mxu0 %v260
          %383 = vmatpush.msra.mxu0 %v259
          %384 = vmatmul.f32.gmra.mxu0 %v242
          %v385 = vpop.f32.mrf.mxu0
          %v386 = vadd.f32 %v366, %v385
          %387 = vdwg.mxu0
          %v388 = vrot.slane %v232, 1
          %v389 = vrot.slane %v233, 1
          %v392 = vsel %vm240, %v388, 0.0
          %v393 = vsel %vm240, %v389, 0.0
          %s394 = scalar_lea.vmem [#allocation4], 512
          %v395 = vld [vmem:[%s394] sm:$0xff]
          %v396 = vld [vmem:[%s394 + $0x8] sm:$0xff]
          %v397 = vld [vmem:[%s394 + $0x10] sm:$0xff]
          %v398 = vld [vmem:[%s394 + $0x18] sm:$0xff]
          %v399 = vld [vmem:[%s394 + $0x20] sm:$0xff]
          %v400 = vld [vmem:[%s394 + $0x28] sm:$0xff]
          %v401 = vld [vmem:[%s394 + $0x30] sm:$0xff]
          %v402 = vld [vmem:[%s394 + $0x38] sm:$0xff]
          %v403 = vld [vmem:[%s394 + $0x40] sm:$0xff]
          %v404 = vld [vmem:[%s394 + $0x48] sm:$0xff]
          %v405 = vld [vmem:[%s394 + $0x50] sm:$0xff]
          %v406 = vld [vmem:[%s394 + $0x58] sm:$0xff]
          %v407 = vld [vmem:[%s394 + $0x60] sm:$0xff]
          %v408 = vld [vmem:[%s394 + $0x68] sm:$0xff]
          %v409 = vld [vmem:[%s394 + $0x70] sm:$0xff]
          %v410 = vld [vmem:[%s394 + $0x78] sm:$0xff]
          %v411 = vld [vmem:[%s394 + $0x80] sm:$0xff]
          %v412 = vld [vmem:[%s394 + $0x88] sm:$0xff]
          %v413 = vld [vmem:[%s394 + $0x90] sm:$0xff]
          %v414 = vld [vmem:[%s394 + $0x98] sm:$0xff]
          %v415 = vld [vmem:[%s394 + $0xa0] sm:$0xff]
          %v416 = vld [vmem:[%s394 + $0xa8] sm:$0xff]
          %v417 = vld [vmem:[%s394 + $0xb0] sm:$0xff]
          %v418 = vld [vmem:[%s394 + $0xb8] sm:$0xff]
          %v419 = vld [vmem:[%s394 + $0xc0] sm:$0xff]
          %v420 = vld [vmem:[%s394 + $0xc8] sm:$0xff]
          %v421 = vld [vmem:[%s394 + $0xd0] sm:$0xff]
          %v422 = vld [vmem:[%s394 + $0xd8] sm:$0xff]
          %v423 = vld [vmem:[%s394 + $0xe0] sm:$0xff]
          %v424 = vld [vmem:[%s394 + $0xe8] sm:$0xff]
          %v425 = vld [vmem:[%s394 + $0xf0] sm:$0xff]
          %v426 = vld [vmem:[%s394 + $0xf8] sm:$0xff]
          %427 = vmatpush.msra.mxu0 %v410
          %428 = vmatpush.msra.mxu0 %v409
          %429 = vmatpush.msra.mxu0 %v408
          %430 = vmatpush.msra.mxu0 %v407
          %431 = vmatpush.msra.mxu0 %v406
          %432 = vmatpush.msra.mxu0 %v405
          %433 = vmatpush.msra.mxu0 %v404
          %434 = vmatpush.msra.mxu0 %v403
          %435 = vmatpush.msra.mxu0 %v402
          %436 = vmatpush.msra.mxu0 %v401
          %437 = vmatpush.msra.mxu0 %v400
          %438 = vmatpush.msra.mxu0 %v399
          %439 = vmatpush.msra.mxu0 %v398
          %440 = vmatpush.msra.mxu0 %v397
          %441 = vmatpush.msra.mxu0 %v396
          %442 = vmatpush.msra.mxu0 %v395
          %443 = vmatmul.f32.gmra.mxu0 %v392
          %v444 = vpop.f32.mrf.mxu0
          %v445 = vadd.f32 0.0, %v444
          %446 = vdwg.mxu0
          %447 = vmatpush.msra.mxu0 %v426
          %448 = vmatpush.msra.mxu0 %v425
          %449 = vmatpush.msra.mxu0 %v424
          %450 = vmatpush.msra.mxu0 %v423
          %451 = vmatpush.msra.mxu0 %v422
          %452 = vmatpush.msra.mxu0 %v421
          %453 = vmatpush.msra.mxu0 %v420
          %454 = vmatpush.msra.mxu0 %v419
          %455 = vmatpush.msra.mxu0 %v418
          %456 = vmatpush.msra.mxu0 %v417
          %457 = vmatpush.msra.mxu0 %v416
          %458 = vmatpush.msra.mxu0 %v415
          %459 = vmatpush.msra.mxu0 %v414
          %460 = vmatpush.msra.mxu0 %v413
          %461 = vmatpush.msra.mxu0 %v412
          %462 = vmatpush.msra.mxu0 %v411
          %463 = vmatmul.f32.gmra.mxu0 %v393
          %v464 = vpop.f32.mrf.mxu0
          %v465 = vadd.f32 %v445, %v464
          %466 = vdwg.mxu0
          %v467 = vadd.f32 %v386, %v465
          %v468 = vxor.u32 %v467, 2147483648
          %v469 = vmul.f32 %v468, 1.442695
          %v470 = vpow.pop %v469
          %v471 = vadd.f32 %v470, 1.0
          %v472 = vrcp.pop %v471
          %v473 = vmul.f32 %v471, %v472
          %v474 = vsub.f32 1.0, %v473
          %v475 = vmul.f32 %v472, %v474
          %v476 = vadd.f32 %v472, %v475
          %vm477 = vweird.f32 %v471
          %vm478 = vweird.f32 %v472
          %vm479 = vmor %vm477, %vm478
          %v480 = vsel %vm479, %v472, %v476
          %v481 = vand.u32 2147483647, %v471
          %vm482 = vcmp.eq.f32.partialorder %v481, 8.507059e+37
          %v483 = vand.u32 %v471, 2147483648
          %v484 = vor.u32 1.1754944e-38, %v483
          %v485 = vsel %vm482, %v484, %v480
          %v486 = vmul.f32 1.0, %v485
          %487 = vst [vmem:[%s196] sm:$0x3] %v486
        $region44: #{tpu_custom_call.1} parent=27 // pred_fallthru
          _
        %s488 = sand.u32 %s89, 1
        %s489 = scalar_lea.sflag [#allocation6], %s488
        %s490 = sand.u32 %s89, 1
        %s491 = smul.addr %s490, 2
        %s492 = scalar_lea.vmem [#allocation9], %s491
        // Predicated region
        $region45: #{tpu_custom_call.1} parent=27 // pred_check
          %p493 = pneg %p99
        $region46: #{tpu_custom_call.1} parent=27 // pred_check_branch
          %495 = sbr.rel (%p493) target = $region48
        $region47: #{tpu_custom_call.1} parent=27 // pred_region
          %497 = vsyncadd %s489, 0
          %s498 = smul.addr %s24, 2
          %s499 = scalar_lea.hbm %s2, %s498
          %s501 = sshll.u32 %s492, 4
          %s502 = int_to_ptr.vmem [resolvable:$true] %s501
          %s503 = sshll.u32 %s499, 4
          %s504 = int_to_ptr.hbm [resolvable:$true] %s503
          %506 = dma.vmem_to_hbm [thread:$0]  %s502, 32, %s504, %s489
        $region48: #{tpu_custom_call.1} parent=27 // pred_fallthru
          _
      $region28: #{tpu_custom_call.1} parent=5 // pred_fallthru
        _
      %p507 = scmp.le.s32.totalorder 2, %s15
      // Predicated region
      $region49: #{tpu_custom_call.1} parent=5 // pred_check
        %p508 = pneg %p507
      $region50: #{tpu_custom_call.1} parent=5 // pred_check_branch
        %510 = sbr.rel (%p508) target = $region52
      $region51: #{tpu_custom_call.1} parent=5 // pred_region
        %s511 = ssub.s32 %s15, 2
        // Predicated region
        $region53: #{tpu_custom_call.1} parent=51 // pred_check
          %p512 = pneg %p105
        $region54: #{tpu_custom_call.1} parent=51 // pred_check_branch
          %514 = sbr.rel (%p512) target = $region56
        $region55: #{tpu_custom_call.1} parent=51 // pred_region
          %s515 = sand.u32 %s90, 1
          %s516 = scalar_lea.sflag [#allocation6], %s515
          %s517 = sand.u32 %s90, 1
          %s518 = smul.addr %s517, 2
          %s519 = scalar_lea.vmem [#allocation9], %s518
          %521 = dma.done %s516, 32
        $region56: #{tpu_custom_call.1} parent=51 // pred_fallthru
          _
      $region52: #{tpu_custom_call.1} parent=5 // pred_fallthru
        _
    $region6: #{tpu_custom_call.1} parent=1 // loop_footer
      %s19 = sadd.s32 1, %s15
    $region7: #{tpu_custom_call.1} parent=1 // loop_footer_branch
      %14 = sbr.rel target = $region3
    $region8: #{tpu_custom_call.1} parent=1 // loop_exit
      _
    %522 = vsyncpa [#allocation5], 1
    %s523 = scalar_lea.sflag [#allocation5], 1
    %524 = vsyncpa %s523, 1
    %525 = vsyncpa [#allocation8], 1
    %s526 = scalar_lea.sflag [#allocation8], 1
    %527 = vsyncpa %s526, 1
    %528 = vsyncpa [#allocation6], 1
    %s529 = scalar_lea.sflag [#allocation6], 1
    %530 = vsyncpa %s529, 1

</llo_original>
